<compile_context>
chip_gen: v6e
topology: v6e:2x2x1
jax: 0.10.0
libtpu: 0.0.40
codegen_flags: <defaults>
</compile_context>

<pallas_src>
import jax
import jax.numpy as jnp
from jax.experimental import pallas as pl
from jax.experimental.pallas import tpu as pltpu

# ----------------------------- config ---------------------------------------
HIDDEN = 32          # config.hidden_size
LN_EPS = 1e-12       # config.layer_norm_eps
BATCH = 2
SEQ = 8


# ----------------------------- kernel ----------------------------------------
def bert_self_output_kernel(acts_ref, w_ref, p_ref, o_ref):
    x = acts_ref[0]            # (M, H) hidden_states
    res = acts_ref[1]          # (M, H) input_states (residual)
    p = p_ref[...]             # (3, H): rows = [bias, ln_gamma, ln_beta]
    bias, gamma, beta = p[0:1, :], p[1:2, :], p[2:3, :]

    # nn.Linear: y = x @ W^T + b.  W is stored pre-transposed as (in, out).
    # fp32 operands, fp32 accumulation — dtype is not a throughput lever at
    # M=16, N=K=32, and it keeps full torch-fp32 accuracy.
    y = jnp.dot(x, w_ref[...],
                preferred_element_type=jnp.float32,
                precision=jax.lax.Precision.HIGHEST) + bias

    # nn.Dropout -> identity (inference/eval semantics).
    # TODO(synk): training-mode dropout would need pltpu.prng_seed/prng_random_bits.
    z = y + res

    # LayerNorm over the hidden dim, fp32 stats; rsqrt on the EUP.
    mean = jnp.mean(z, axis=-1, keepdims=True)
    zc = z - mean
    var = jnp.mean(zc * zc, axis=-1, keepdims=True)
    o_ref[...] = zc * jax.lax.rsqrt(var + LN_EPS) * gamma + beta


# ----------------------------- wrapper ----------------------------------------
def bert_self_output(hidden_states, input_states, w_t, params):
    """hidden_states / input_states: (B, S, H) fp32.
    w_t: (H_in, H_out) = torch dense.weight.T.
    params: (3, H) rows = [dense bias, LN gamma, LN beta] (packed once at init)."""
    B, S, H = hidden_states.shape
    M = B * S
    # Collapse batch into the matmul M dim and stack the two activations into a
    # single operand -> one activation DMA instead of two.
    acts = jnp.stack([hidden_states.reshape(M, H),
                      input_states.reshape(M, H)], axis=0)        # (2, M, H)

    vmem = pl.BlockSpec(memory_space=pltpu.MemorySpace.VMEM)
    out2 = pl.pallas_call(
        bert_self_output_kernel,
        out_shape=jax.ShapeDtypeStruct((M, H), jnp.float32),
        in_specs=[vmem, vmem, vmem],
        out_specs=vmem,
    )(acts, w_t, params)
    return out2.reshape(B, S, H)


# ----------------------------- reference (pure JAX, fp32) ---------------------
def bert_self_output_ref(hidden_states, input_states, w_t, b, gamma, beta):
    y = jnp.einsum("bsh,ho->bso", hidden_states, w_t,
                   precision=jax.lax.Precision.HIGHEST) + b.reshape(1, 1, -1)
    z = y + input_states
    mean = jnp.mean(z, axis=-1, keepdims=True)
    var = jnp.mean((z - mean) ** 2, axis=-1, keepdims=True)
    return (z - mean) * jax.lax.rsqrt(var + LN_EPS) * gamma.reshape(1, 1, -1) \
        + beta.reshape(1, 1, -1)


# ----------------------------- main --------------------------------------------
if __name__ == "__main__":
    key = jax.random.PRNGKey(0)
    k1, k2, k3, k4 = jax.random.split(key, 4)

    hidden_states = jax.random.normal(k1, (BATCH, SEQ, HIDDEN), jnp.float32)
    input_states = jax.random.normal(k2, (BATCH, SEQ, HIDDEN), jnp.float32)
    # nn.Linear(H, H): torch weight is (out, in); stored transposed as (in, out).
    w_t = 0.02 * jax.random.normal(k3, (HIDDEN, HIDDEN), jnp.float32)
    b = 0.01 * jax.random.normal(k4, (1, HIDDEN), jnp.float32)
    gamma = jnp.ones((1, HIDDEN), jnp.float32)
    beta = jnp.zeros((1, HIDDEN), jnp.float32)
    # One-time (init-side) packing of the per-channel parameter vectors.
    params = jnp.concatenate([b, gamma, beta], axis=0)            # (3, H)

    out = bert_self_output(hidden_states, input_states, w_t, params)
    jax.block_until_ready(out)

    ref = bert_self_output_ref(hidden_states, input_states, w_t, b, gamma, beta)
    jax.block_until_ready(ref)

    assert out.shape == (BATCH, SEQ, HIDDEN)
    assert bool(jnp.all(jnp.isfinite(out)))
    err = float(jnp.max(jnp.abs(out - ref)))
    # fp32 matmul operands -> tight tolerance vs. the fp32 reference.
    assert err < 1e-4, err
    print("KERNEL_OK")
</pallas_src>

<mosaic_0001>
module attributes {stable_mosaic.version = 11 : i64} {
  func.func @bert_self_output_kernel(%arg0: memref<2x16x32xf32, #tpu.memory_space<vmem>>, %arg1: memref<32x32xf32, #tpu.memory_space<vmem>>, %arg2: memref<3x32xf32, #tpu.memory_space<vmem>>, %arg3: memref<16x32xf32, #tpu.memory_space<vmem>>) attributes {dimension_semantics = [], scalar_prefetch = 0 : i64, scratch_operands = 0 : i64, tpu.core_type = #tpu.core_type<tc>} {
    %c0 = arith.constant 0 : index
    %c0_0 = arith.constant 0 : index
    %c0_1 = arith.constant 0 : index
    %0 = vector.load %arg0[%c0, %c0_0, %c0_1] : memref<2x16x32xf32, #tpu.memory_space<vmem>>, vector<1x16x32xf32>
    %1 = vector.shape_cast %0 : vector<1x16x32xf32> to vector<16x32xf32>
    %c1 = arith.constant 1 : index
    %c0_2 = arith.constant 0 : index
    %c0_3 = arith.constant 0 : index
    %2 = vector.load %arg0[%c1, %c0_2, %c0_3] : memref<2x16x32xf32, #tpu.memory_space<vmem>>, vector<1x16x32xf32>
    %3 = vector.shape_cast %2 : vector<1x16x32xf32> to vector<16x32xf32>
    %c0_4 = arith.constant 0 : index
    %c0_5 = arith.constant 0 : index
    %4 = vector.load %arg2[%c0_4, %c0_5] : memref<3x32xf32, #tpu.memory_space<vmem>>, vector<3x32xf32>
    %5 = vector.extract_strided_slice %4 {offsets = [0, 0], sizes = [1, 32], strides = [1, 1]} : vector<3x32xf32> to vector<1x32xf32>
    %6 = vector.extract_strided_slice %4 {offsets = [1, 0], sizes = [1, 32], strides = [1, 1]} : vector<3x32xf32> to vector<1x32xf32>
    %7 = vector.extract_strided_slice %4 {offsets = [2, 0], sizes = [1, 32], strides = [1, 1]} : vector<3x32xf32> to vector<1x32xf32>
    %c0_6 = arith.constant 0 : index
    %c0_7 = arith.constant 0 : index
    %8 = vector.load %arg1[%c0_6, %c0_7] : memref<32x32xf32, #tpu.memory_space<vmem>>, vector<32x32xf32>
    %cst = arith.constant dense<0.000000e+00> : vector<16x32xf32>
    %9 = tpu.matmul %1, %8, %cst {dimension_numbers = #tpu.dot_dimension_numbers<[1], [0], [0], [1], [0, 0, 1, 1], [], []>, precision = #tpu.contract_precision<fp32>} : vector<16x32xf32>, vector<32x32xf32>, vector<16x32xf32> -> vector<16x32xf32>
    %10 = vector.broadcast %5 : vector<1x32xf32> to vector<16x32xf32>
    %11 = arith.addf %9, %10 : vector<16x32xf32>
    %12 = arith.addf %11, %3 : vector<16x32xf32>
    %cst_8 = arith.constant dense<0.000000e+00> : vector<16xf32>
    %13 = vector.multi_reduction <add>, %12, %cst_8 [1] : vector<16x32xf32> to vector<16xf32>
    %14 = vector.shape_cast %13 : vector<16xf32> to vector<16x1xf32>
    %cst_9 = arith.constant 3.200000e+01 : f32
    %15 = vector.broadcast %cst_9 : f32 to vector<16x1xf32>
    %16 = arith.divf %14, %15 : vector<16x1xf32>
    %17 = vector.broadcast %16 : vector<16x1xf32> to vector<16x32xf32>
    %18 = arith.subf %12, %17 : vector<16x32xf32>
    %19 = arith.mulf %18, %18 : vector<16x32xf32>
    %cst_10 = arith.constant dense<0.000000e+00> : vector<16xf32>
    %20 = vector.multi_reduction <add>, %19, %cst_10 [1] : vector<16x32xf32> to vector<16xf32>
    %21 = vector.shape_cast %20 : vector<16xf32> to vector<16x1xf32>
    %cst_11 = arith.constant 3.200000e+01 : f32
    %22 = vector.broadcast %cst_11 : f32 to vector<16x1xf32>
    %23 = arith.divf %21, %22 : vector<16x1xf32>
    %cst_12 = arith.constant 9.99999996E-13 : f32
    %24 = vector.broadcast %cst_12 : f32 to vector<16x1xf32>
    %25 = arith.addf %23, %24 : vector<16x1xf32>
    %26 = math.rsqrt %25 : vector<16x1xf32>
    %27 = vector.broadcast %26 : vector<16x1xf32> to vector<16x32xf32>
    %28 = arith.mulf %18, %27 : vector<16x32xf32>
    %29 = vector.broadcast %6 : vector<1x32xf32> to vector<16x32xf32>
    %30 = arith.mulf %28, %29 : vector<16x32xf32>
    %31 = vector.broadcast %7 : vector<1x32xf32> to vector<16x32xf32>
    %32 = arith.addf %30, %31 : vector<16x32xf32>
    %c0_13 = arith.constant 0 : index
    %c0_14 = arith.constant 0 : index
    %33 = vector.load %arg3[%c0_13, %c0_14] : memref<16x32xf32, #tpu.memory_space<vmem>>, vector<16x32xf32>
    tpu.vector_store %arg3[%c0_13, %c0_14], %32 {strides = array<i32>} : memref<16x32xf32, #tpu.memory_space<vmem>>, vector<16x32xf32>,
    return
  }
}

</mosaic_0001>

<llo_original>
// kernel: tpu_custom_call.1
$region0: #{tpu_custom_call.1}
  #allocation0 [shape = 'u32[]', space=smem, size = 0x4, offset = 0x4, fixed_abs, tag = 'smem constant byte address 0x4 - core index']
  #allocation1 [shape = 'u32[144,128]{1,0:T(1,128)}', space=vmem, size = 0x12000, scoped, tag = 'internal scratch']
  %s0 = inlined_call_operand.hbm [shape: f32[2,16,32], index: 0, kind: input, shape index: {}]
  %s1 = inlined_call_operand.hbm [shape: f32[32,32], index: 1, kind: input, shape index: {}]
  %s2 = inlined_call_operand.hbm [shape: f32[3,32], index: 2, kind: input, shape index: {}]
  %s3 = inlined_call_operand.hbm [shape: f32[16,32], index: 3, kind: output, shape index: {}]
  %s4 = sld [smem:[#allocation0]]
  $region34: #{tpu_custom_call.1} parent=0
    _
  %s6 = ssub.s32 1, %s4
  %s7 = scalar_select 0, %s6, %s4
  $region1: #{tpu_custom_call.1} parent=0
    #allocation2 [shape = 'u8[16384]{0}', space=vmem, size = 0x4000, scoped, tag = 'input window, operand 0, single buffered']
    #allocation3 [shape = 's32[1]{0}', space=sflag, size = 0x4, scoped, tag = 'scoped memory for tpu_custom_call.1']
    #allocation4 [shape = 's32[1]{0}', space=sflag, size = 0x4, scoped, tag = 'scoped memory for tpu_custom_call.1']
    #allocation5 [shape = 'u8[16384]{0}', space=vmem, size = 0x4000, scoped, tag = 'input window, operand 1, single buffered']
    #allocation6 [shape = 's32[1]{0}', space=sflag, size = 0x4, scoped, tag = 'scoped memory for tpu_custom_call.1']
    #allocation7 [shape = 'u8[2048]{0}', space=vmem, size = 0x800, scoped, tag = 'input window, operand 2, single buffered']
    #allocation8 [shape = 'u8[8192]{0}', space=vmem, size = 0x2000, scoped, tag = 'output window, operand 0, single buffered']
    %8 = vsyncpa [#allocation3], 0
    %9 = vsyncpa [#allocation6], 0
    %10 = vsyncpa [#allocation4], 0
    // Predicated region
    $region2: #{tpu_custom_call.1} parent=1 // pred_check
      _
    $region3: #{tpu_custom_call.1} parent=1 // pred_check_branch
      %12 = sbr.rel (0) target = $region5
    $region4: #{tpu_custom_call.1} parent=1 // pred_region
      %s14 = ssub.s32 512, 512
      %15 = vsyncadd [#allocation3], %s14
      %s16 = sshll.u32 [#allocation2], 4
      %s17 = int_to_ptr.vmem [resolvable:$true] %s16
      %22 = dma.hbm_to_vmem [thread:$0]  %s0, 512, %s17, [#allocation3], 128, 128, 8
    $region5: #{tpu_custom_call.1} parent=1 // pred_fallthru
      _
    // Predicated region
    $region6: #{tpu_custom_call.1} parent=1 // pred_check
      _
    $region7: #{tpu_custom_call.1} parent=1 // pred_check_branch
      %24 = sbr.rel (0) target = $region9
    $region8: #{tpu_custom_call.1} parent=1 // pred_region
      %s26 = ssub.s32 512, 512
      %27 = vsyncadd [#allocation6], %s26
      %s28 = sshll.u32 [#allocation5], 4
      %s29 = int_to_ptr.vmem [resolvable:$true] %s28
      %34 = dma.hbm_to_vmem [thread:$0]  %s1, 512, %s29, [#allocation6], 128, 128, 8
    $region9: #{tpu_custom_call.1} parent=1 // pred_fallthru
      _
    // Predicated region
    $region10: #{tpu_custom_call.1} parent=1 // pred_check
      _
    $region11: #{tpu_custom_call.1} parent=1 // pred_check_branch
      %36 = sbr.rel (0) target = $region13
    $region12: #{tpu_custom_call.1} parent=1 // pred_region
      %s38 = ssub.s32 64, 64
      %39 = vsyncadd [#allocation6], %s38
      %s41 = sshll.u32 [#allocation7], 4
      %s42 = int_to_ptr.vmem [resolvable:$true] %s41
      %44 = dma.hbm_to_vmem [thread:$0]  %s2, 64, %s42, [#allocation6]
    $region13: #{tpu_custom_call.1} parent=1 // pred_fallthru
      _
    // Predicated region
    $region14: #{tpu_custom_call.1} parent=1 // pred_check
      _
    $region15: #{tpu_custom_call.1} parent=1 // pred_check_branch
      %46 = sbr.rel (0) target = $region17
    $region16: #{tpu_custom_call.1} parent=1 // pred_region
      %47 = dma.done [#allocation3], 512
    $region17: #{tpu_custom_call.1} parent=1 // pred_fallthru
      _
    // Predicated region
    $region18: #{tpu_custom_call.1} parent=1 // pred_check
      _
    $region19: #{tpu_custom_call.1} parent=1 // pred_check_branch
      %49 = sbr.rel (0) target = $region21
    $region20: #{tpu_custom_call.1} parent=1 // pred_region
      %50 = dma.done [#allocation6], 512
    $region21: #{tpu_custom_call.1} parent=1 // pred_fallthru
      _
    // Predicated region
    $region22: #{tpu_custom_call.1} parent=1 // pred_check
      _
    $region23: #{tpu_custom_call.1} parent=1 // pred_check_branch
      %52 = sbr.rel (0) target = $region25
    $region24: #{tpu_custom_call.1} parent=1 // pred_region
      %53 = dma.done [#allocation6], 64
    $region25: #{tpu_custom_call.1} parent=1 // pred_fallthru
      _
    %v54 = vld [vmem:[#allocation2] sm:$0xff]
    %v55 = vld [vmem:[#allocation2 + $0x8] sm:$0xff]
    %s56 = scalar_lea.vmem [#allocation2], 16
    %v57 = vld [vmem:[%s56] sm:$0xff]
    %v58 = vld [vmem:[%s56 + $0x8] sm:$0xff]
    %v59 = vld [vmem:[#allocation7] sm:$0x7]
    %v60 = vld [vmem:[#allocation5] sm:$0xff]
    %v61 = vld [vmem:[#allocation5 + $0x8] sm:$0xff]
    %v62 = vld [vmem:[#allocation5 + $0x10] sm:$0xff]
    %v63 = vld [vmem:[#allocation5 + $0x18] sm:$0xff]
    %v64 = vlaneseq
    %v65 = vshrl.u32 %v64, 7
    %v66 = vsub.s32 0, %v65
    %v67 = vrot.slane %v59, %v66
    %vm68 = vcmask 261120
    %v70 = vsel %vm68, %v54, 0
    %v73 = vsel %vm68, %v55, 0
    %75 = vmatprep.subr.mxu0 0.0
    %76 = vmatpush1.msra.mxu0 0.0
    %77 = vmatprep.subr.mxu0 0.0
    %78 = vmatpush1.msra.mxu0 0.0
    %79 = vmatprep.subr.mxu0 0.0
    %80 = vmatpush1.msra.mxu0 0.0
    %81 = vmatprep.subr.mxu0 0.0
    %82 = vmatpush1.msra.mxu0 0.0
    %83 = vmatprep.subr.mxu0 0.0
    %84 = vmatpush1.msra.mxu0 0.0
    %85 = vmatprep.subr.mxu0 0.0
    %86 = vmatpush1.msra.mxu0 0.0
    %87 = vmatprep.subr.mxu0 0.0
    %88 = vmatpush1.msra.mxu0 0.0
    %89 = vmatprep.subr.mxu0 0.0
    %90 = vmatpush1.msra.mxu0 0.0
    %91 = vmatprep.subr.mxu0 0.0
    %92 = vmatpush1.msra.mxu0 0.0
    %93 = vmatprep.subr.mxu0 0.0
    %94 = vmatpush1.msra.mxu0 0.0
    %95 = vmatprep.subr.mxu0 0.0
    %96 = vmatpush1.msra.mxu0 0.0
    %97 = vmatprep.subr.mxu0 0.0
    %98 = vmatpush1.msra.mxu0 0.0
    %99 = vmatprep.subr.mxu0 0.0
    %v100 = vand.u32 %v63, 4294901760
    %101 = vmatpush1.msra.mxu0 %v100
    %102 = vmatprep.subr.mxu0 0.0
    %v103 = vand.u32 %v62, 4294901760
    %104 = vmatpush1.msra.mxu0 %v103
    %105 = vmatprep.subr.mxu0 0.0
    %v106 = vand.u32 %v61, 4294901760
    %107 = vmatpush1.msra.mxu0 %v106
    %108 = vmatprep.subr.mxu0 0.0
    %v109 = vand.u32 %v60, 4294901760
    %110 = vmatpush1.msra.mxu0 %v109
    %111 = vmatprep.subr.mxu0 0.0
    %112 = vmatpush2.msra.mxu0 0.0
    %113 = vmatprep.subr.mxu0 0.0
    %114 = vmatpush2.msra.mxu0 0.0
    %115 = vmatprep.subr.mxu0 0.0
    %116 = vmatpush2.msra.mxu0 0.0
    %117 = vmatprep.subr.mxu0 0.0
    %118 = vmatpush2.msra.mxu0 0.0
    %119 = vmatprep.subr.mxu0 0.0
    %120 = vmatpush2.msra.mxu0 0.0
    %121 = vmatprep.subr.mxu0 0.0
    %122 = vmatpush2.msra.mxu0 0.0
    %123 = vmatprep.subr.mxu0 0.0
    %124 = vmatpush2.msra.mxu0 0.0
    %125 = vmatprep.subr.mxu0 0.0
    %126 = vmatpush2.msra.mxu0 0.0
    %127 = vmatprep.subr.mxu0 0.0
    %128 = vmatpush2.msra.mxu0 0.0
    %129 = vmatprep.subr.mxu0 0.0
    %130 = vmatpush2.msra.mxu0 0.0
    %131 = vmatprep.subr.mxu0 0.0
    %132 = vmatpush2.msra.mxu0 0.0
    %133 = vmatprep.subr.mxu0 0.0
    %134 = vmatpush2.msra.mxu0 0.0
    %135 = vmatprep.subr.mxu0 0.0
    %136 = vmatpush2.msra.mxu0 0.0
    %137 = vmatprep.subr.mxu0 0.0
    %138 = vmatpush2.msra.mxu0 0.0
    %139 = vmatprep.subr.mxu0 0.0
    %140 = vmatpush2.msra.mxu0 0.0
    %141 = vmatprep.subr.mxu0 0.0
    %142 = vmatpush2.msra.mxu0 0.0
    %143 = vmatprep.mubr.f32.mxu0 0.0
    %v144 = vand.u32 %v70, 4294901760
    %v145 = vsub.f32 %v70, %v144
    %v146 = vand.u32 %v145, 4294901760
    %v147 = vsub.f32 %v145, %v146
    %v148 = vand.u32 %v147, 4294901760
    %149 = vmatmul.mubr.f32.gmra.mxu0 %v148
    %v150 = vpop.f32.mrf.mxu0
    %v151 = vadd.f32 %v67, %v150
    %v152 = vpop.f32.mrf.mxu0
    %153 = vmatprep.mubr.f32.mxu0 0.0
    %v154 = vand.u32 %v73, 4294901760
    %v155 = vsub.f32 %v73, %v154
    %v156 = vand.u32 %v155, 4294901760
    %v157 = vsub.f32 %v155, %v156
    %v158 = vand.u32 %v157, 4294901760
    %159 = vmatmul.mubr.f32.gmra.mxu0 %v158
    %v160 = vpop.f32.mrf.mxu0
    %v161 = vadd.f32 %v67, %v160
    %v162 = vpop.f32.mrf.mxu0
    %163 = vdwg.mxu0
    %164 = vmatprep.subr.mxu0 0.0
    %165 = vmatpush1.msra.mxu0 0.0
    %166 = vmatprep.subr.mxu0 0.0
    %167 = vmatpush1.msra.mxu0 0.0
    %168 = vmatprep.subr.mxu0 0.0
    %169 = vmatpush1.msra.mxu0 0.0
    %170 = vmatprep.subr.mxu0 0.0
    %171 = vmatpush1.msra.mxu0 0.0
    %172 = vmatprep.subr.mxu0 0.0
    %173 = vmatpush1.msra.mxu0 0.0
    %174 = vmatprep.subr.mxu0 0.0
    %175 = vmatpush1.msra.mxu0 0.0
    %176 = vmatprep.subr.mxu0 0.0
    %177 = vmatpush1.msra.mxu0 0.0
    %178 = vmatprep.subr.mxu0 0.0
    %179 = vmatpush1.msra.mxu0 0.0
    %180 = vmatprep.subr.mxu0 0.0
    %181 = vmatpush1.msra.mxu0 0.0
    %182 = vmatprep.subr.mxu0 0.0
    %183 = vmatpush1.msra.mxu0 0.0
    %184 = vmatprep.subr.mxu0 0.0
    %185 = vmatpush1.msra.mxu0 0.0
    %186 = vmatprep.subr.mxu0 0.0
    %187 = vmatpush1.msra.mxu0 0.0
    %188 = vmatprep.subr.mxu0 0.0
    %v189 = vand.u32 %v63, 4294901760
    %v190 = vsub.f32 %v63, %v189
    %v191 = vand.u32 %v190, 4294901760
    %v192 = vsub.f32 %v190, %v191
    %v193 = vand.u32 %v192, 4294901760
    %194 = vmatpush1.msra.mxu0 %v193
    %195 = vmatprep.subr.mxu0 0.0
    %v196 = vand.u32 %v62, 4294901760
    %v197 = vsub.f32 %v62, %v196
    %v198 = vand.u32 %v197, 4294901760
    %v199 = vsub.f32 %v197, %v198
    %v200 = vand.u32 %v199, 4294901760
    %201 = vmatpush1.msra.mxu0 %v200
    %202 = vmatprep.subr.mxu0 0.0
    %v203 = vand.u32 %v61, 4294901760
    %v204 = vsub.f32 %v61, %v203
    %v205 = vand.u32 %v204, 4294901760
    %v206 = vsub.f32 %v204, %v205
    %v207 = vand.u32 %v206, 4294901760
    %208 = vmatpush1.msra.mxu0 %v207
    %209 = vmatprep.subr.mxu0 0.0
    %v210 = vand.u32 %v60, 4294901760
    %v211 = vsub.f32 %v60, %v210
    %v212 = vand.u32 %v211, 4294901760
    %v213 = vsub.f32 %v211, %v212
    %v214 = vand.u32 %v213, 4294901760
    %215 = vmatpush1.msra.mxu0 %v214
    %216 = vmatprep.subr.mxu0 0.0
    %217 = vmatpush2.msra.mxu0 0.0
    %218 = vmatprep.subr.mxu0 0.0
    %219 = vmatpush2.msra.mxu0 0.0
    %220 = vmatprep.subr.mxu0 0.0
    %221 = vmatpush2.msra.mxu0 0.0
    %222 = vmatprep.subr.mxu0 0.0
    %223 = vmatpush2.msra.mxu0 0.0
    %224 = vmatprep.subr.mxu0 0.0
    %225 = vmatpush2.msra.mxu0 0.0
    %226 = vmatprep.subr.mxu0 0.0
    %227 = vmatpush2.msra.mxu0 0.0
    %228 = vmatprep.subr.mxu0 0.0
    %229 = vmatpush2.msra.mxu0 0.0
    %230 = vmatprep.subr.mxu0 0.0
    %231 = vmatpush2.msra.mxu0 0.0
    %232 = vmatprep.subr.mxu0 0.0
    %233 = vmatpush2.msra.mxu0 0.0
    %234 = vmatprep.subr.mxu0 0.0
    %235 = vmatpush2.msra.mxu0 0.0
    %236 = vmatprep.subr.mxu0 0.0
    %237 = vmatpush2.msra.mxu0 0.0
    %238 = vmatprep.subr.mxu0 0.0
    %239 = vmatpush2.msra.mxu0 0.0
    %240 = vmatprep.subr.mxu0 0.0
    %241 = vmatpush2.msra.mxu0 0.0
    %242 = vmatprep.subr.mxu0 0.0
    %243 = vmatpush2.msra.mxu0 0.0
    %244 = vmatprep.subr.mxu0 0.0
    %245 = vmatpush2.msra.mxu0 0.0
    %246 = vmatprep.subr.mxu0 0.0
    %247 = vmatpush2.msra.mxu0 0.0
    %248 = vmatprep.mubr.f32.mxu0 0.0
    %v249 = vand.u32 %v70, 4294901760
    %250 = vmatmul.mubr.f32.gmra.mxu0 %v249
    %v251 = vpop.f32.mrf.mxu0
    %v252 = vadd.f32 %v151, %v251
    %v253 = vpop.f32.mrf.mxu0
    %254 = vmatprep.mubr.f32.mxu0 0.0
    %v255 = vand.u32 %v73, 4294901760
    %256 = vmatmul.mubr.f32.gmra.mxu0 %v255
    %v257 = vpop.f32.mrf.mxu0
    %v258 = vadd.f32 %v161, %v257
    %v259 = vpop.f32.mrf.mxu0
    %260 = vdwg.mxu0
    %261 = vmatprep.subr.mxu0 0.0
    %262 = vmatpush1.msra.mxu0 0.0
    %263 = vmatprep.subr.mxu0 0.0
    %264 = vmatpush1.msra.mxu0 0.0
    %265 = vmatprep.subr.mxu0 0.0
    %266 = vmatpush1.msra.mxu0 0.0
    %267 = vmatprep.subr.mxu0 0.0
    %268 = vmatpush1.msra.mxu0 0.0
    %269 = vmatprep.subr.mxu0 0.0
    %270 = vmatpush1.msra.mxu0 0.0
    %271 = vmatprep.subr.mxu0 0.0
    %272 = vmatpush1.msra.mxu0 0.0
    %273 = vmatprep.subr.mxu0 0.0
    %274 = vmatpush1.msra.mxu0 0.0
    %275 = vmatprep.subr.mxu0 0.0
    %276 = vmatpush1.msra.mxu0 0.0
    %277 = vmatprep.subr.mxu0 0.0
    %278 = vmatpush1.msra.mxu0 0.0
    %279 = vmatprep.subr.mxu0 0.0
    %280 = vmatpush1.msra.mxu0 0.0
    %281 = vmatprep.subr.mxu0 0.0
    %282 = vmatpush1.msra.mxu0 0.0
    %283 = vmatprep.subr.mxu0 0.0
    %284 = vmatpush1.msra.mxu0 0.0
    %285 = vmatprep.subr.mxu0 0.0
    %v286 = vand.u32 %v63, 4294901760
    %v287 = vsub.f32 %v63, %v286
    %288 = vmatpush1.msra.mxu0 %v287
    %289 = vmatprep.subr.mxu0 0.0
    %v290 = vand.u32 %v62, 4294901760
    %v291 = vsub.f32 %v62, %v290
    %292 = vmatpush1.msra.mxu0 %v291
    %293 = vmatprep.subr.mxu0 0.0
    %v294 = vand.u32 %v61, 4294901760
    %v295 = vsub.f32 %v61, %v294
    %296 = vmatpush1.msra.mxu0 %v295
    %297 = vmatprep.subr.mxu0 0.0
    %v298 = vand.u32 %v60, 4294901760
    %v299 = vsub.f32 %v60, %v298
    %300 = vmatpush1.msra.mxu0 %v299
    %301 = vmatprep.subr.mxu0 0.0
    %302 = vmatpush2.msra.mxu0 0.0
    %303 = vmatprep.subr.mxu0 0.0
    %304 = vmatpush2.msra.mxu0 0.0
    %305 = vmatprep.subr.mxu0 0.0
    %306 = vmatpush2.msra.mxu0 0.0
    %307 = vmatprep.subr.mxu0 0.0
    %308 = vmatpush2.msra.mxu0 0.0
    %309 = vmatprep.subr.mxu0 0.0
    %310 = vmatpush2.msra.mxu0 0.0
    %311 = vmatprep.subr.mxu0 0.0
    %312 = vmatpush2.msra.mxu0 0.0
    %313 = vmatprep.subr.mxu0 0.0
    %314 = vmatpush2.msra.mxu0 0.0
    %315 = vmatprep.subr.mxu0 0.0
    %316 = vmatpush2.msra.mxu0 0.0
    %317 = vmatprep.subr.mxu0 0.0
    %318 = vmatpush2.msra.mxu0 0.0
    %319 = vmatprep.subr.mxu0 0.0
    %320 = vmatpush2.msra.mxu0 0.0
    %321 = vmatprep.subr.mxu0 0.0
    %322 = vmatpush2.msra.mxu0 0.0
    %323 = vmatprep.subr.mxu0 0.0
    %324 = vmatpush2.msra.mxu0 0.0
    %325 = vmatprep.subr.mxu0 0.0
    %326 = vmatpush2.msra.mxu0 0.0
    %327 = vmatprep.subr.mxu0 0.0
    %328 = vmatpush2.msra.mxu0 0.0
    %329 = vmatprep.subr.mxu0 0.0
    %330 = vmatpush2.msra.mxu0 0.0
    %331 = vmatprep.subr.mxu0 0.0
    %332 = vmatpush2.msra.mxu0 0.0
    %333 = vmatprep.mubr.f32.mxu0 0.0
    %v334 = vand.u32 %v70, 4294901760
    %v335 = vsub.f32 %v70, %v334
    %336 = vmatmul.mubr.f32.gmra.mxu0 %v335
    %v337 = vpop.f32.mrf.mxu0
    %v338 = vadd.f32 %v252, %v337
    %v339 = vpop.f32.mrf.mxu0
    %340 = vmatprep.mubr.f32.mxu0 0.0
    %v341 = vand.u32 %v73, 4294901760
    %v342 = vsub.f32 %v73, %v341
    %343 = vmatmul.mubr.f32.gmra.mxu0 %v342
    %v344 = vpop.f32.mrf.mxu0
    %v345 = vadd.f32 %v258, %v344
    %v346 = vpop.f32.mrf.mxu0
    %347 = vdwg.mxu0
    %348 = vmatprep.subr.mxu0 0.0
    %349 = vmatpush1.msra.mxu0 0.0
    %350 = vmatprep.subr.mxu0 0.0
    %351 = vmatpush1.msra.mxu0 0.0
    %352 = vmatprep.subr.mxu0 0.0
    %353 = vmatpush1.msra.mxu0 0.0
    %354 = vmatprep.subr.mxu0 0.0
    %355 = vmatpush1.msra.mxu0 0.0
    %356 = vmatprep.subr.mxu0 0.0
    %357 = vmatpush1.msra.mxu0 0.0
    %358 = vmatprep.subr.mxu0 0.0
    %359 = vmatpush1.msra.mxu0 0.0
    %360 = vmatprep.subr.mxu0 0.0
    %361 = vmatpush1.msra.mxu0 0.0
    %362 = vmatprep.subr.mxu0 0.0
    %363 = vmatpush1.msra.mxu0 0.0
    %364 = vmatprep.subr.mxu0 0.0
    %365 = vmatpush1.msra.mxu0 0.0
    %366 = vmatprep.subr.mxu0 0.0
    %367 = vmatpush1.msra.mxu0 0.0
    %368 = vmatprep.subr.mxu0 0.0
    %369 = vmatpush1.msra.mxu0 0.0
    %370 = vmatprep.subr.mxu0 0.0
    %371 = vmatpush1.msra.mxu0 0.0
    %372 = vmatprep.subr.mxu0 0.0
    %v373 = vand.u32 %v63, 4294901760
    %374 = vmatpush1.msra.mxu0 %v373
    %375 = vmatprep.subr.mxu0 0.0
    %v376 = vand.u32 %v62, 4294901760
    %377 = vmatpush1.msra.mxu0 %v376
    %378 = vmatprep.subr.mxu0 0.0
    %v379 = vand.u32 %v61, 4294901760
    %380 = vmatpush1.msra.mxu0 %v379
    %381 = vmatprep.subr.mxu0 0.0
    %v382 = vand.u32 %v60, 4294901760
    %383 = vmatpush1.msra.mxu0 %v382
    %384 = vmatprep.subr.mxu0 0.0
    %385 = vmatpush2.msra.mxu0 0.0
    %386 = vmatprep.subr.mxu0 0.0
    %387 = vmatpush2.msra.mxu0 0.0
    %388 = vmatprep.subr.mxu0 0.0
    %389 = vmatpush2.msra.mxu0 0.0
    %390 = vmatprep.subr.mxu0 0.0
    %391 = vmatpush2.msra.mxu0 0.0
    %392 = vmatprep.subr.mxu0 0.0
    %393 = vmatpush2.msra.mxu0 0.0
    %394 = vmatprep.subr.mxu0 0.0
    %395 = vmatpush2.msra.mxu0 0.0
    %396 = vmatprep.subr.mxu0 0.0
    %397 = vmatpush2.msra.mxu0 0.0
    %398 = vmatprep.subr.mxu0 0.0
    %399 = vmatpush2.msra.mxu0 0.0
    %400 = vmatprep.subr.mxu0 0.0
    %401 = vmatpush2.msra.mxu0 0.0
    %402 = vmatprep.subr.mxu0 0.0
    %403 = vmatpush2.msra.mxu0 0.0
    %404 = vmatprep.subr.mxu0 0.0
    %405 = vmatpush2.msra.mxu0 0.0
    %406 = vmatprep.subr.mxu0 0.0
    %407 = vmatpush2.msra.mxu0 0.0
    %408 = vmatprep.subr.mxu0 0.0
    %409 = vmatpush2.msra.mxu0 0.0
    %410 = vmatprep.subr.mxu0 0.0
    %411 = vmatpush2.msra.mxu0 0.0
    %412 = vmatprep.subr.mxu0 0.0
    %413 = vmatpush2.msra.mxu0 0.0
    %414 = vmatprep.subr.mxu0 0.0
    %415 = vmatpush2.msra.mxu0 0.0
    %416 = vmatprep.mubr.f32.mxu0 0.0
    %v417 = vand.u32 %v70, 4294901760
    %v418 = vsub.f32 %v70, %v417
    %v419 = vand.u32 %v418, 4294901760
    %420 = vmatmul.mubr.f32.gmra.mxu0 %v419
    %v421 = vpop.f32.mrf.mxu0
    %v422 = vadd.f32 %v338, %v421
    %v423 = vpop.f32.mrf.mxu0
    %424 = vmatprep.mubr.f32.mxu0 0.0
    %v425 = vand.u32 %v73, 4294901760
    %v426 = vsub.f32 %v73, %v425
    %v427 = vand.u32 %v426, 4294901760
    %428 = vmatmul.mubr.f32.gmra.mxu0 %v427
    %v429 = vpop.f32.mrf.mxu0
    %v430 = vadd.f32 %v345, %v429
    %v431 = vpop.f32.mrf.mxu0
    %432 = vdwg.mxu0
    %433 = vmatprep.subr.mxu0 0.0
    %434 = vmatpush1.msra.mxu0 0.0
    %435 = vmatprep.subr.mxu0 0.0
    %436 = vmatpush1.msra.mxu0 0.0
    %437 = vmatprep.subr.mxu0 0.0
    %438 = vmatpush1.msra.mxu0 0.0
    %439 = vmatprep.subr.mxu0 0.0
    %440 = vmatpush1.msra.mxu0 0.0
    %441 = vmatprep.subr.mxu0 0.0
    %442 = vmatpush1.msra.mxu0 0.0
    %443 = vmatprep.subr.mxu0 0.0
    %444 = vmatpush1.msra.mxu0 0.0
    %445 = vmatprep.subr.mxu0 0.0
    %446 = vmatpush1.msra.mxu0 0.0
    %447 = vmatprep.subr.mxu0 0.0
    %448 = vmatpush1.msra.mxu0 0.0
    %449 = vmatprep.subr.mxu0 0.0
    %450 = vmatpush1.msra.mxu0 0.0
    %451 = vmatprep.subr.mxu0 0.0
    %452 = vmatpush1.msra.mxu0 0.0
    %453 = vmatprep.subr.mxu0 0.0
    %454 = vmatpush1.msra.mxu0 0.0
    %455 = vmatprep.subr.mxu0 0.0
    %456 = vmatpush1.msra.mxu0 0.0
    %457 = vmatprep.subr.mxu0 0.0
    %v458 = vand.u32 %v63, 4294901760
    %v459 = vsub.f32 %v63, %v458
    %v460 = vand.u32 %v459, 4294901760
    %461 = vmatpush1.msra.mxu0 %v460
    %462 = vmatprep.subr.mxu0 0.0
    %v463 = vand.u32 %v62, 4294901760
    %v464 = vsub.f32 %v62, %v463
    %v465 = vand.u32 %v464, 4294901760
    %466 = vmatpush1.msra.mxu0 %v465
    %467 = vmatprep.subr.mxu0 0.0
    %v468 = vand.u32 %v61, 4294901760
    %v469 = vsub.f32 %v61, %v468
    %v470 = vand.u32 %v469, 4294901760
    %471 = vmatpush1.msra.mxu0 %v470
    %472 = vmatprep.subr.mxu0 0.0
    %v473 = vand.u32 %v60, 4294901760
    %v474 = vsub.f32 %v60, %v473
    %v475 = vand.u32 %v474, 4294901760
    %476 = vmatpush1.msra.mxu0 %v475
    %477 = vmatprep.subr.mxu0 0.0
    %478 = vmatpush2.msra.mxu0 0.0
    %479 = vmatprep.subr.mxu0 0.0
    %480 = vmatpush2.msra.mxu0 0.0
    %481 = vmatprep.subr.mxu0 0.0
    %482 = vmatpush2.msra.mxu0 0.0
    %483 = vmatprep.subr.mxu0 0.0
    %484 = vmatpush2.msra.mxu0 0.0
    %485 = vmatprep.subr.mxu0 0.0
    %486 = vmatpush2.msra.mxu0 0.0
    %487 = vmatprep.subr.mxu0 0.0
    %488 = vmatpush2.msra.mxu0 0.0
    %489 = vmatprep.subr.mxu0 0.0
    %490 = vmatpush2.msra.mxu0 0.0
    %491 = vmatprep.subr.mxu0 0.0
    %492 = vmatpush2.msra.mxu0 0.0
    %493 = vmatprep.subr.mxu0 0.0
    %494 = vmatpush2.msra.mxu0 0.0
    %495 = vmatprep.subr.mxu0 0.0
    %496 = vmatpush2.msra.mxu0 0.0
    %497 = vmatprep.subr.mxu0 0.0
    %498 = vmatpush2.msra.mxu0 0.0
    %499 = vmatprep.subr.mxu0 0.0
    %500 = vmatpush2.msra.mxu0 0.0
    %501 = vmatprep.subr.mxu0 0.0
    %502 = vmatpush2.msra.mxu0 0.0
    %503 = vmatprep.subr.mxu0 0.0
    %504 = vmatpush2.msra.mxu0 0.0
    %505 = vmatprep.subr.mxu0 0.0
    %506 = vmatpush2.msra.mxu0 0.0
    %507 = vmatprep.subr.mxu0 0.0
    %508 = vmatpush2.msra.mxu0 0.0
    %509 = vmatprep.mubr.f32.mxu0 0.0
    %v510 = vand.u32 %v70, 4294901760
    %511 = vmatmul.mubr.f32.gmra.mxu0 %v510
    %v512 = vpop.f32.mrf.mxu0
    %v513 = vadd.f32 %v422, %v512
    %v514 = vpop.f32.mrf.mxu0
    %515 = vmatprep.mubr.f32.mxu0 0.0
    %v516 = vand.u32 %v73, 4294901760
    %517 = vmatmul.mubr.f32.gmra.mxu0 %v516
    %v518 = vpop.f32.mrf.mxu0
    %v519 = vadd.f32 %v430, %v518
    %v520 = vpop.f32.mrf.mxu0
    %521 = vdwg.mxu0
    %522 = vmatprep.subr.mxu0 0.0
    %523 = vmatpush1.msra.mxu0 0.0
    %524 = vmatprep.subr.mxu0 0.0
    %525 = vmatpush1.msra.mxu0 0.0
    %526 = vmatprep.subr.mxu0 0.0
    %527 = vmatpush1.msra.mxu0 0.0
    %528 = vmatprep.subr.mxu0 0.0
    %529 = vmatpush1.msra.mxu0 0.0
    %530 = vmatprep.subr.mxu0 0.0
    %531 = vmatpush1.msra.mxu0 0.0
    %532 = vmatprep.subr.mxu0 0.0
    %533 = vmatpush1.msra.mxu0 0.0
    %534 = vmatprep.subr.mxu0 0.0
    %535 = vmatpush1.msra.mxu0 0.0
    %536 = vmatprep.subr.mxu0 0.0
    %537 = vmatpush1.msra.mxu0 0.0
    %538 = vmatprep.subr.mxu0 0.0
    %539 = vmatpush1.msra.mxu0 0.0
    %540 = vmatprep.subr.mxu0 0.0
    %541 = vmatpush1.msra.mxu0 0.0
    %542 = vmatprep.subr.mxu0 0.0
    %543 = vmatpush1.msra.mxu0 0.0
    %544 = vmatprep.subr.mxu0 0.0
    %545 = vmatpush1.msra.mxu0 0.0
    %546 = vmatprep.subr.mxu0 0.0
    %v547 = vand.u32 %v63, 4294901760
    %548 = vmatpush1.msra.mxu0 %v547
    %549 = vmatprep.subr.mxu0 0.0
    %v550 = vand.u32 %v62, 4294901760
    %551 = vmatpush1.msra.mxu0 %v550
    %552 = vmatprep.subr.mxu0 0.0
    %v553 = vand.u32 %v61, 4294901760
    %554 = vmatpush1.msra.mxu0 %v553
    %555 = vmatprep.subr.mxu0 0.0
    %v556 = vand.u32 %v60, 4294901760
    %557 = vmatpush1.msra.mxu0 %v556
    %558 = vmatprep.subr.mxu0 0.0
    %559 = vmatpush2.msra.mxu0 0.0
    %560 = vmatprep.subr.mxu0 0.0
    %561 = vmatpush2.msra.mxu0 0.0
    %562 = vmatprep.subr.mxu0 0.0
    %563 = vmatpush2.msra.mxu0 0.0
    %564 = vmatprep.subr.mxu0 0.0
    %565 = vmatpush2.msra.mxu0 0.0
    %566 = vmatprep.subr.mxu0 0.0
    %567 = vmatpush2.msra.mxu0 0.0
    %568 = vmatprep.subr.mxu0 0.0
    %569 = vmatpush2.msra.mxu0 0.0
    %570 = vmatprep.subr.mxu0 0.0
    %571 = vmatpush2.msra.mxu0 0.0
    %572 = vmatprep.subr.mxu0 0.0
    %573 = vmatpush2.msra.mxu0 0.0
    %574 = vmatprep.subr.mxu0 0.0
    %575 = vmatpush2.msra.mxu0 0.0
    %576 = vmatprep.subr.mxu0 0.0
    %577 = vmatpush2.msra.mxu0 0.0
    %578 = vmatprep.subr.mxu0 0.0
    %579 = vmatpush2.msra.mxu0 0.0
    %580 = vmatprep.subr.mxu0 0.0
    %581 = vmatpush2.msra.mxu0 0.0
    %582 = vmatprep.subr.mxu0 0.0
    %583 = vmatpush2.msra.mxu0 0.0
    %584 = vmatprep.subr.mxu0 0.0
    %585 = vmatpush2.msra.mxu0 0.0
    %586 = vmatprep.subr.mxu0 0.0
    %587 = vmatpush2.msra.mxu0 0.0
    %588 = vmatprep.subr.mxu0 0.0
    %589 = vmatpush2.msra.mxu0 0.0
    %590 = vmatprep.mubr.f32.mxu0 0.0
    %v591 = vand.u32 %v70, 4294901760
    %592 = vmatmul.mubr.f32.gmra.mxu0 %v591
    %v593 = vpop.f32.mrf.mxu0
    %v594 = vadd.f32 %v513, %v593
    %v595 = vpop.f32.mrf.mxu0
    %596 = vmatprep.mubr.f32.mxu0 0.0
    %v597 = vand.u32 %v73, 4294901760
    %598 = vmatmul.mubr.f32.gmra.mxu0 %v597
    %v599 = vpop.f32.mrf.mxu0
    %v600 = vadd.f32 %v519, %v599
    %v601 = vpop.f32.mrf.mxu0
    %602 = vdwg.mxu0
    %v603 = vadd.f32 %v594, %v57
    %v604 = vadd.f32 %v600, %v58
    %v605 = vsel %vm68, %v603, 0.0
    %606 = vadd.xlane.f32.xlu0 %v605
    %v607 = vpop.xlane.xlu0 %606
    %v608 = vsel %vm68, %v604, 0.0
    %609 = vadd.xlane.f32.xlu0 %v608
    %v610 = vpop.xlane.xlu0 %609
    %v611 = vrcp.pop 32.0
    %v612 = vmul.f32 %v607, %v611
    %v613 = vmul.f32 %v610, %v611
    %v614 = vsub.f32 %v603, %v612
    %v615 = vsub.f32 %v604, %v613
    %v616 = vmul.f32 %v614, %v614
    %v617 = vmul.f32 %v615, %v615
    %v618 = vsel %vm68, %v616, 0.0
    %619 = vadd.xlane.f32.xlu0 %v618
    %v620 = vpop.xlane.xlu0 %619
    %v621 = vsel %vm68, %v617, 0.0
    %622 = vadd.xlane.f32.xlu0 %v621
    %v623 = vpop.xlane.xlu0 %622
    %v624 = vmul.f32 %v620, %v611
    %v625 = vmul.f32 %v623, %v611
    %v626 = vadd.f32 %v624, 1e-12
    %v627 = vadd.f32 %v625, 1e-12
    %v628 = vrsqrt.pop %v626
    %v629 = vrsqrt.pop %v627
    %v630 = vmul.f32 %v614, %v628
    %v631 = vmul.f32 %v615, %v629
    %v632 = vlaneseq
    %v633 = vshrl.u32 %v632, 7
    %v634 = vsub.s32 1, %v633
    %v635 = vrot.slane %v59, %v634
    %v636 = vmul.f32 %v630, %v635
    %v637 = vmul.f32 %v631, %v635
    %v638 = vlaneseq
    %v639 = vshrl.u32 %v638, 7
    %v640 = vsub.s32 2, %v639
    %v641 = vrot.slane %v59, %v640
    %v642 = vadd.f32 %v636, %v641
    %v643 = vadd.f32 %v637, %v641
    %644 = vst.msk [vmem:[#allocation8] sm:$0xff] %vm68, %v642
    %645 = vst.msk [vmem:[#allocation8 + $0x8] sm:$0xff] %vm68, %v643
    // Predicated region
    $region26: #{tpu_custom_call.1} parent=1 // pred_check
      _
    $region27: #{tpu_custom_call.1} parent=1 // pred_check_branch
      %647 = sbr.rel (0) target = $region29
    $region28: #{tpu_custom_call.1} parent=1 // pred_region
      %s649 = ssub.s32 256, 256
      %650 = vsyncadd [#allocation4], %s649
      %s651 = sshll.u32 [#allocation8], 4
      %s652 = int_to_ptr.vmem [resolvable:$true] %s651
      %657 = dma.vmem_to_hbm [thread:$0]  %s652, 256, %s3, [#allocation4], 128, 128, 8
    $region29: #{tpu_custom_call.1} parent=1 // pred_fallthru
      _
    // Predicated region
    $region30: #{tpu_custom_call.1} parent=1 // pred_check
      _
    $region31: #{tpu_custom_call.1} parent=1 // pred_check_branch
      %659 = sbr.rel (0) target = $region33
    $region32: #{tpu_custom_call.1} parent=1 // pred_region
      %660 = dma.done [#allocation4], 256
    $region33: #{tpu_custom_call.1} parent=1 // pred_fallthru
      _
    %661 = vsyncpa [#allocation3], 1
    %662 = vsyncpa [#allocation6], 1
    %663 = vsyncpa [#allocation4], 1

</llo_original>
